<compile_context>
chip_gen: v7x
topology: tpu7x:2x2x1
jax: 0.10.0
libtpu: 0.0.40
codegen_flags: <defaults>
</compile_context>

<pallas_src>
import jax
import jax.numpy as jnp
from jax.experimental import pallas as pl
from jax.experimental.pallas import tpu as pltpu


def _round_up(x, m):
    return (x + m - 1) // m * m


def _cdiv(a, b):
    return (a + b - 1) // b


# ----------------------------------------------------------------------------
# Pallas kernel: per-prior cross-entropy + positive-masked smooth-L1.
# Block shapes (prior axis is (S, 128) = sublane x lane dense):
#   conf_ref  : (1, C, S, 128)   any float dtype, upcast to f32 in-kernel
#   conft_ref : (1, 1, S, 128)   int32, -1 marks padded priors
#   loc_ref   : (1, 4, S, 128)
#   loct_ref  : (1, 4, S, 128)
# Outputs:
#   mining_ref: (1, S, 128) f32  CE for valid non-positive priors,
#                                0 for positives, -1e30 for padded priors
#   stats_ref : (1, 1, 8, 128) f32  per-tile lane-partials:
#                 row 0 = smooth-L1 (positives), row 1 = positive count,
#                 row 2 = CE summed over positives, rows 3..7 = 0
# ----------------------------------------------------------------------------
def _ce_smoothl1_kernel(conf_ref, conft_ref, loc_ref, loct_ref,
                        mining_ref, stats_ref):
    C = conf_ref.shape[1]
    tgt = conft_ref[0, 0]                       # (S, 128) int32
    valid = tgt >= 0
    pos = tgt > 0

    # --- class reduction, per-class slices loaded straight from VMEM ---------
    m = conf_ref[0, 0].astype(jnp.float32)
    for c in range(1, C):
        m = jnp.maximum(m, conf_ref[0, c].astype(jnp.float32))

    ssum = jnp.zeros_like(m)
    tgt_logit = jnp.zeros_like(m)
    for c in range(C):
        cls = conf_ref[0, c].astype(jnp.float32)
        ssum = ssum + jnp.exp(cls - m)
        tgt_logit = jnp.where(tgt == c, cls, tgt_logit)
    ce = jnp.log(ssum) + m - tgt_logit          # (S, 128)
    ce = jnp.where(valid, ce, 0.0)              # select-based mask (NaN safe)

    # --- smooth-L1 (beta = 1, summed over 4 coords), positives only ----------
    locl = jnp.zeros_like(m)
    for k in range(4):
        d = loc_ref[0, k].astype(jnp.float32) - loct_ref[0, k].astype(jnp.float32)
        ad = jnp.abs(d)
        locl = locl + jnp.where(ad < 1.0, 0.5 * ad * ad, ad - 0.5)
    locl = jnp.where(pos, locl, 0.0)

    # --- per-prior mining map (only per-prior output) -------------------------
    mining = jnp.where(pos, 0.0, jnp.where(valid, ce, jnp.float32(-1e30)))
    mining_ref[...] = mining[None]

    # --- in-kernel reductions -> tiny stats output ----------------------------
    posf = pos.astype(jnp.float32)
    locl_lane = jnp.sum(locl, axis=0, keepdims=True)                   # (1,128)
    pos_lane = jnp.sum(posf, axis=0, keepdims=True)                    # (1,128)
    pos_ce_lane = jnp.sum(jnp.where(pos, ce, 0.0), axis=0, keepdims=True)
    fill = jnp.zeros((5, mining.shape[1]), jnp.float32)
    stats = jnp.concatenate([locl_lane, pos_lane, pos_ce_lane, fill], axis=0)
    stats_ref[...] = stats[None, None]          # (1, 1, 8, 128)


def _multibox_losses(loc_all, conf_all, loc_t_all, conf_t_all, negpos_ratio):
    """Per-row multibox losses for T*B stacked rows.

    loc_all: (BT, P, 4), conf_all: (BT, P, C), loc_t_all: (BT, P, 4),
    conf_t_all: (BT, P) int.  Returns (loss_l, loss_c, num_pos), each (BT,).
    """
    BT, P, C = conf_all.shape

    # --- tiling: prior axis -> (n_sub, 128), S sublanes per grid step --------
    n_sub = _cdiv(P, 128)
    S_CAP = 64                                  # 8192 priors/step, ~1-4 MiB incl. dbl-buf
    if n_sub <= S_CAP:
        n_tiles, S = 1, n_sub                   # full-dim block (no /8 constraint)
    else:
        n_tiles = _cdiv(n_sub, S_CAP)
        S = _round_up(_cdiv(n_sub, n_tiles), 8)
    n_sub_pad = n_tiles * S
    p_pad = n_sub_pad * 128
    pad = p_pad - P

    # --- layout plumbing (single fused XLA relayout pass per array) ----------
    def relayout(x):                            # (BT, P, K) -> (BT, K, n_sub, 128)
        y = jnp.transpose(x, (0, 2, 1))
        if pad:
            y = jnp.pad(y, ((0, 0), (0, 0), (0, pad)))
        return y.reshape(BT, x.shape[2], n_sub_pad, 128)

    conf_k = relayout(conf_all)
    loc_k = relayout(loc_all)
    loct_k = relayout(loc_t_all)
    conft = conf_t_all.astype(jnp.int32)
    if pad:
        conft = jnp.pad(conft, ((0, 0), (0, pad)), constant_values=-1)
    conft_k = conft.reshape(BT, 1, n_sub_pad, 128)

    itemsize = int(jnp.dtype(conf_all.dtype).itemsize)
    cost = pl.CostEstimate(
        flops=BT * p_pad * (5 * C + 45),
        transcendentals=BT * p_pad * (C + 1),
        bytes_accessed=(BT * p_pad * (C + 8) * itemsize      # conf + loc + loc_t
                        + BT * p_pad * 4                     # conf_t (int32)
                        + BT * p_pad * 4                     # mining out
                        + BT * n_tiles * 8 * 128 * 4),       # stats out
    )

    idx4 = lambda bt, pi: (bt, 0, pi, 0)
    mining, stats = pl.pallas_call(
        _ce_smoothl1_kernel,
        grid=(BT, n_tiles),
        in_specs=[
            pl.BlockSpec((1, C, S, 128), idx4),
            pl.BlockSpec((1, 1, S, 128), idx4),
            pl.BlockSpec((1, 4, S, 128), idx4),
            pl.BlockSpec((1, 4, S, 128), idx4),
        ],
        out_specs=[
            pl.BlockSpec((1, S, 128), lambda bt, pi: (bt, pi, 0)),
            pl.BlockSpec((1, 1, 8, 128), lambda bt, pi: (bt, pi, 0, 0)),
        ],
        out_shape=[
            jax.ShapeDtypeStruct((BT, n_sub_pad, 128), jnp.float32),
            jax.ShapeDtypeStruct((BT, n_tiles, 8, 128), jnp.float32),
        ],
        compiler_params=pltpu.CompilerParams(
            dimension_semantics=("parallel", "parallel"),
            vmem_limit_bytes=32 * 1024 * 1024,
        ),
        cost_estimate=cost,
    )(conf_k, conft_k, loc_k, loct_k)

    # --- per-row reductions from in-kernel stats ------------------------------
    loss_l = jnp.sum(stats[:, :, 0, :], axis=(1, 2))                 # (BT,)
    num_pos_f = jnp.sum(stats[:, :, 1, :], axis=(1, 2))
    pos_ce = jnp.sum(stats[:, :, 2, :], axis=(1, 2))
    num_pos = jnp.round(num_pos_f).astype(jnp.int32)
    num_neg = jnp.minimum(negpos_ratio * num_pos, P - 1)             # (BT,)

    # --- hard-negative mining: single value sort + per-row threshold ---------
    # (replaces PyTorch's double argsort; ties at the threshold can differ
    #  marginally from the stable rank cutoff)
    mining2 = mining.reshape(BT, p_pad)
    sorted_desc = -jnp.sort(-mining2, axis=1)
    thr_idx = jnp.clip(num_neg - 1, 0, p_pad - 1)
    thresh = jnp.take_along_axis(sorted_desc, thr_idx[:, None], axis=1)[:, 0]
    thresh = jnp.where(num_neg > 0, thresh, jnp.float32(jnp.inf))
    # positives carry 0 in the mining map and padding carries -1e30 (< thresh),
    # so this sum is exactly CE over the selected hard negatives.
    neg_ce = jnp.sum(jnp.where(mining2 >= thresh[:, None], mining2, 0.0), axis=1)
    loss_c = pos_ce + neg_ce
    return loss_l, loss_c, num_pos


# ----------------------------------------------------------------------------
# Plain-JAX glue: SSD matching / encoding
# ----------------------------------------------------------------------------
def point_form(priors):
    return jnp.concatenate([priors[:, :2] - priors[:, 2:] / 2,
                            priors[:, :2] + priors[:, 2:] / 2], axis=1)


def jaccard(box_a, box_b):
    max_xy = jnp.minimum(box_a[:, None, 2:], box_b[None, :, 2:])
    min_xy = jnp.maximum(box_a[:, None, :2], box_b[None, :, :2])
    inter_wh = jnp.maximum(max_xy - min_xy, 0.0)
    inter = inter_wh[..., 0] * inter_wh[..., 1]
    area_a = ((box_a[:, 2] - box_a[:, 0]) * (box_a[:, 3] - box_a[:, 1]))[:, None]
    area_b = ((box_b[:, 2] - box_b[:, 0]) * (box_b[:, 3] - box_b[:, 1]))[None, :]
    return inter / (area_a + area_b - inter)


def encode(matched, priors, variances):
    g_cxcy = (matched[:, :2] + matched[:, 2:]) / 2 - priors[:, :2]
    g_cxcy = g_cxcy / (variances[0] * priors[:, 2:])
    g_wh = (matched[:, 2:] - matched[:, :2]) / priors[:, 2:]
    g_wh = jnp.log(g_wh) / variances[1]
    return jnp.concatenate([g_cxcy, g_wh], axis=1)


def match(threshold, truths, priors, variances, labels):
    overlaps = jaccard(truths, point_form(priors))        # (nobj, P)
    best_prior_idx = jnp.argmax(overlaps, axis=1)         # (nobj,)
    best_truth_overlap = jnp.max(overlaps, axis=0)        # (P,)
    best_truth_idx = jnp.argmax(overlaps, axis=0)         # (P,)
    best_truth_overlap = best_truth_overlap.at[best_prior_idx].set(2.0)
    best_truth_idx = best_truth_idx.at[best_prior_idx].set(
        jnp.arange(truths.shape[0], dtype=best_truth_idx.dtype))
    matches = truths[best_truth_idx]                      # (P, 4)
    conf = labels[best_truth_idx].astype(jnp.int32) + 1   # (P,)
    conf = jnp.where(best_truth_overlap < threshold, 0, conf)
    loc = encode(matches, priors, variances)
    return loc, conf


def seq_multibox_loss(seq_predictions, priors, targets, *, num_classes,
                      overlap_thresh=0.5, negpos_ratio=3):
    """JAX/Pallas equivalent of seqMultiBoxLoss.forward (association=False)."""
    variances = [0.1, 0.2]
    T = len(seq_predictions)
    B = seq_predictions[0][0].shape[0]
    P = priors.shape[0]

    loc_all = jnp.stack([p[0] for p in seq_predictions])    # (T, B, P, 4)
    conf_all = jnp.stack([p[1] for p in seq_predictions])   # (T, B, P, C)

    # matching (plain-JAX glue): vmap over (batch, time) when all per-frame GT
    # arrays share a shape; otherwise fall back to python loops.
    shapes = {tuple(targets[i][t].shape) for i in range(B) for t in range(T)}
    if len(shapes) == 1:
        tgt_bt = jnp.stack([jnp.stack([targets[i][t] for t in range(T)])
                            for i in range(B)])             # (B, T, nobj, 5)

        def match_one(tg):
            return match(overlap_thresh, tg[:, :4], priors, variances, tg[:, 4])

        loc_t_bt, conf_t_bt = jax.vmap(jax.vmap(match_one))(tgt_bt)
        loc_t_all = jnp.transpose(loc_t_bt, (1, 0, 2, 3))    # (T, B, P, 4)
        conf_t_all = jnp.transpose(conf_t_bt, (1, 0, 2))     # (T, B, P)
    else:
        loc_rows, conf_rows = [], []
        for t in range(T):
            lt, ct = [], []
            for i in range(B):
                l, c = match(overlap_thresh, targets[i][t][:, :-1], priors,
                             variances, targets[i][t][:, -1])
                lt.append(l)
                ct.append(c)
            loc_rows.append(jnp.stack(lt))
            conf_rows.append(jnp.stack(ct))
        loc_t_all = jnp.stack(loc_rows)
        conf_t_all = jnp.stack(conf_rows)

    # one gridded Pallas call over all T*B rows (amortizes launch overhead,
    # keeps the pipeline warm across time steps; BT rows shard over both TCs
    # on v7x via the "parallel" row axis)
    BT = T * B
    loss_l_row, loss_c_row, num_pos_row = _multibox_losses(
        loc_all.reshape(BT, P, 4), conf_all.reshape(BT, P, num_classes),
        loc_t_all.reshape(BT, P, 4), conf_t_all.reshape(BT, P), negpos_ratio)

    loss_l_t = jnp.sum(loss_l_row.reshape(T, B), axis=1)
    loss_c_t = jnp.sum(loss_c_row.reshape(T, B), axis=1)
    n_t = jnp.sum(num_pos_row.reshape(T, B), axis=1).astype(jnp.float32)
    # Same hazard as the PyTorch original: n_t == 0 -> inf/nan.
    seq_loss_l = jnp.sum(loss_l_t / n_t)
    seq_loss_c = jnp.sum(loss_c_t / n_t)

    loss_association = jnp.float32(0.0)
    # TODO(synk): association branch (softmax + decode + per-class NMS top-k,
    # association=True) is not implemented; module default association=False.
    return seq_loss_l / T, seq_loss_c / T, loss_association / T


# ----------------------------------------------------------------------------
# Example / smoke test
# ----------------------------------------------------------------------------
if __name__ == "__main__":
    # P deliberately not a multiple of 128 to exercise the padded-tail masking.
    B, T, P, C, NOBJ = 2, 3, 120, 8, 3

    key = jax.random.PRNGKey(0)
    keys = jax.random.split(key, 4)

    # priors in (cx, cy, w, h) form
    cxcy = jax.random.uniform(keys[0], (P, 2), minval=0.2, maxval=0.8)
    wh = jax.random.uniform(keys[1], (P, 2), minval=0.1, maxval=0.4)
    priors = jnp.concatenate([cxcy, wh], axis=1).astype(jnp.float32)

    # sequence of (loc, conf) predictions
    seq_predictions = []
    for t in range(T):
        kl, kc = jax.random.split(jax.random.fold_in(keys[2], t))
        loc = jax.random.normal(kl, (B, P, 4), dtype=jnp.float32)
        conf = jax.random.normal(kc, (B, P, C), dtype=jnp.float32)
        seq_predictions.append((loc, conf))

    # targets[idx][t] : (NOBJ, 5) = (xmin, ymin, xmax, ymax, label)
    targets = []
    for idx in range(B):
        per_t = []
        for t in range(T):
            k = jax.random.fold_in(keys[3], idx * T + t)
            k1, k2, k3 = jax.random.split(k, 3)
            ctr = jax.random.uniform(k1, (NOBJ, 2), minval=0.3, maxval=0.7)
            sz = jax.random.uniform(k2, (NOBJ, 2), minval=0.1, maxval=0.3)
            box = jnp.concatenate([ctr - sz / 2, ctr + sz / 2], axis=1)
            lab = jax.random.randint(k3, (NOBJ,), 0, C - 1).astype(jnp.float32)
            per_t.append(jnp.concatenate([box, lab[:, None]],
                                         axis=1).astype(jnp.float32))
        targets.append(per_t)

    loss_l, loss_c, loss_assoc = seq_multibox_loss(
        seq_predictions, priors, targets,
        num_classes=C, overlap_thresh=0.5, negpos_ratio=3)

    jax.block_until_ready((loss_l, loss_c, loss_assoc))
    assert jnp.isfinite(loss_l) and jnp.isfinite(loss_c)
    print("KERNEL_OK")
</pallas_src>

<mosaic_0001>
module attributes {stable_mosaic.version = 11 : i64} {
  func.func @_ce_smoothl1_kernel(%arg0: i32, %arg1: i32, %arg2: memref<1x8x1x128xf32, #tpu.memory_space<vmem>>, %arg3: memref<1x1x1x128xi32, #tpu.memory_space<vmem>>, %arg4: memref<1x4x1x128xf32, #tpu.memory_space<vmem>>, %arg5: memref<1x4x1x128xf32, #tpu.memory_space<vmem>>, %arg6: memref<1x1x128xf32, #tpu.memory_space<vmem>>, %arg7: memref<1x1x8x128xf32, #tpu.memory_space<vmem>>) attributes {dimension_semantics = [#tpu.dimension_semantics<parallel>, #tpu.dimension_semantics<parallel>], iteration_bounds = array<i64: 6, 1>, scalar_prefetch = 0 : i64, scratch_operands = 0 : i64, tpu.core_type = #tpu.core_type<tc>, window_params = [{transform_indices = @transform_0, window_bounds = array<i64: 1, 8, 1, 128>}, {transform_indices = @transform_1, window_bounds = array<i64: 1, 1, 1, 128>}, {transform_indices = @transform_2, window_bounds = array<i64: 1, 4, 1, 128>}, {transform_indices = @transform_3, window_bounds = array<i64: 1, 4, 1, 128>}, {transform_indices = @transform_4, window_bounds = array<i64: 1, 1, 128>}, {transform_indices = @transform_5, window_bounds = array<i64: 1, 1, 8, 128>}]} {
    %c0 = arith.constant 0 : index
    %c0_0 = arith.constant 0 : index
    %c0_1 = arith.constant 0 : index
    %c0_2 = arith.constant 0 : index
    %0 = vector.load %arg3[%c0, %c0_0, %c0_1, %c0_2] : memref<1x1x1x128xi32, #tpu.memory_space<vmem>>, vector<1x1x1x128xi32>
    %1 = vector.shape_cast %0 : vector<1x1x1x128xi32> to vector<1x128xi32>
    %c0_i32 = arith.constant 0 : i32
    %2 = vector.broadcast %c0_i32 : i32 to vector<1x128xi32>
    %3 = arith.cmpi sge, %1, %2 : vector<1x128xi32>
    %c0_i32_3 = arith.constant 0 : i32
    %4 = vector.broadcast %c0_i32_3 : i32 to vector<1x128xi32>
    %5 = arith.cmpi sgt, %1, %4 : vector<1x128xi32>
    %c0_4 = arith.constant 0 : index
    %c0_5 = arith.constant 0 : index
    %c0_6 = arith.constant 0 : index
    %c0_7 = arith.constant 0 : index
    %6 = vector.load %arg2[%c0_4, %c0_5, %c0_6, %c0_7] : memref<1x8x1x128xf32, #tpu.memory_space<vmem>>, vector<1x1x1x128xf32>
    %7 = vector.shape_cast %6 : vector<1x1x1x128xf32> to vector<1x128xf32>
    %c0_8 = arith.constant 0 : index
    %c1 = arith.constant 1 : index
    %c0_9 = arith.constant 0 : index
    %c0_10 = arith.constant 0 : index
    %8 = vector.load %arg2[%c0_8, %c1, %c0_9, %c0_10] : memref<1x8x1x128xf32, #tpu.memory_space<vmem>>, vector<1x1x1x128xf32>
    %9 = vector.shape_cast %8 : vector<1x1x1x128xf32> to vector<1x128xf32>
    %10 = arith.maximumf %7, %9 : vector<1x128xf32>
    %c0_11 = arith.constant 0 : index
    %c2 = arith.constant 2 : index
    %c0_12 = arith.constant 0 : index
    %c0_13 = arith.constant 0 : index
    %11 = vector.load %arg2[%c0_11, %c2, %c0_12, %c0_13] : memref<1x8x1x128xf32, #tpu.memory_space<vmem>>, vector<1x1x1x128xf32>
    %12 = vector.shape_cast %11 : vector<1x1x1x128xf32> to vector<1x128xf32>
    %13 = arith.maximumf %10, %12 : vector<1x128xf32>
    %c0_14 = arith.constant 0 : index
    %c3 = arith.constant 3 : index
    %c0_15 = arith.constant 0 : index
    %c0_16 = arith.constant 0 : index
    %14 = vector.load %arg2[%c0_14, %c3, %c0_15, %c0_16] : memref<1x8x1x128xf32, #tpu.memory_space<vmem>>, vector<1x1x1x128xf32>
    %15 = vector.shape_cast %14 : vector<1x1x1x128xf32> to vector<1x128xf32>
    %16 = arith.maximumf %13, %15 : vector<1x128xf32>
    %c0_17 = arith.constant 0 : index
    %c4 = arith.constant 4 : index
    %c0_18 = arith.constant 0 : index
    %c0_19 = arith.constant 0 : index
    %17 = vector.load %arg2[%c0_17, %c4, %c0_18, %c0_19] : memref<1x8x1x128xf32, #tpu.memory_space<vmem>>, vector<1x1x1x128xf32>
    %18 = vector.shape_cast %17 : vector<1x1x1x128xf32> to vector<1x128xf32>
    %19 = arith.maximumf %16, %18 : vector<1x128xf32>
    %c0_20 = arith.constant 0 : index
    %c5 = arith.constant 5 : index
    %c0_21 = arith.constant 0 : index
    %c0_22 = arith.constant 0 : index
    %20 = vector.load %arg2[%c0_20, %c5, %c0_21, %c0_22] : memref<1x8x1x128xf32, #tpu.memory_space<vmem>>, vector<1x1x1x128xf32>
    %21 = vector.shape_cast %20 : vector<1x1x1x128xf32> to vector<1x128xf32>
    %22 = arith.maximumf %19, %21 : vector<1x128xf32>
    %c0_23 = arith.constant 0 : index
    %c6 = arith.constant 6 : index
    %c0_24 = arith.constant 0 : index
    %c0_25 = arith.constant 0 : index
    %23 = vector.load %arg2[%c0_23, %c6, %c0_24, %c0_25] : memref<1x8x1x128xf32, #tpu.memory_space<vmem>>, vector<1x1x1x128xf32>
    %24 = vector.shape_cast %23 : vector<1x1x1x128xf32> to vector<1x128xf32>
    %25 = arith.maximumf %22, %24 : vector<1x128xf32>
    %c0_26 = arith.constant 0 : index
    %c7 = arith.constant 7 : index
    %c0_27 = arith.constant 0 : index
    %c0_28 = arith.constant 0 : index
    %26 = vector.load %arg2[%c0_26, %c7, %c0_27, %c0_28] : memref<1x8x1x128xf32, #tpu.memory_space<vmem>>, vector<1x1x1x128xf32>
    %27 = vector.shape_cast %26 : vector<1x1x1x128xf32> to vector<1x128xf32>
    %28 = arith.maximumf %25, %27 : vector<1x128xf32>
    %cst = arith.constant 0.000000e+00 : f32
    %29 = vector.broadcast %cst : f32 to vector<1x128xf32>
    %cst_29 = arith.constant 0.000000e+00 : f32
    %30 = vector.broadcast %cst_29 : f32 to vector<1x128xf32>
    %c0_30 = arith.constant 0 : index
    %c0_31 = arith.constant 0 : index
    %c0_32 = arith.constant 0 : index
    %c0_33 = arith.constant 0 : index
    %31 = vector.load %arg2[%c0_30, %c0_31, %c0_32, %c0_33] : memref<1x8x1x128xf32, #tpu.memory_space<vmem>>, vector<1x1x1x128xf32>
    %32 = vector.shape_cast %31 : vector<1x1x1x128xf32> to vector<1x128xf32>
    %33 = arith.subf %32, %28 : vector<1x128xf32>
    %34 = math.exp %33 : vector<1x128xf32>
    %35 = arith.addf %29, %34 : vector<1x128xf32>
    %c0_i32_34 = arith.constant 0 : i32
    %36 = vector.broadcast %c0_i32_34 : i32 to vector<1x128xi32>
    %37 = arith.cmpi eq, %1, %36 : vector<1x128xi32>
    %38 = arith.select %37, %32, %30 : vector<1x128xi1>, vector<1x128xf32>
    %c0_35 = arith.constant 0 : index
    %c1_36 = arith.constant 1 : index
    %c0_37 = arith.constant 0 : index
    %c0_38 = arith.constant 0 : index
    %39 = vector.load %arg2[%c0_35, %c1_36, %c0_37, %c0_38] : memref<1x8x1x128xf32, #tpu.memory_space<vmem>>, vector<1x1x1x128xf32>
    %40 = vector.shape_cast %39 : vector<1x1x1x128xf32> to vector<1x128xf32>
    %41 = arith.subf %40, %28 : vector<1x128xf32>
    %42 = math.exp %41 : vector<1x128xf32>
    %43 = arith.addf %35, %42 : vector<1x128xf32>
    %c1_i32 = arith.constant 1 : i32
    %44 = vector.broadcast %c1_i32 : i32 to vector<1x128xi32>
    %45 = arith.cmpi eq, %1, %44 : vector<1x128xi32>
    %46 = arith.select %45, %40, %38 : vector<1x128xi1>, vector<1x128xf32>
    %c0_39 = arith.constant 0 : index
    %c2_40 = arith.constant 2 : index
    %c0_41 = arith.constant 0 : index
    %c0_42 = arith.constant 0 : index
    %47 = vector.load %arg2[%c0_39, %c2_40, %c0_41, %c0_42] : memref<1x8x1x128xf32, #tpu.memory_space<vmem>>, vector<1x1x1x128xf32>
    %48 = vector.shape_cast %47 : vector<1x1x1x128xf32> to vector<1x128xf32>
    %49 = arith.subf %48, %28 : vector<1x128xf32>
    %50 = math.exp %49 : vector<1x128xf32>
    %51 = arith.addf %43, %50 : vector<1x128xf32>
    %c2_i32 = arith.constant 2 : i32
    %52 = vector.broadcast %c2_i32 : i32 to vector<1x128xi32>
    %53 = arith.cmpi eq, %1, %52 : vector<1x128xi32>
    %54 = arith.select %53, %48, %46 : vector<1x128xi1>, vector<1x128xf32>
    %c0_43 = arith.constant 0 : index
    %c3_44 = arith.constant 3 : index
    %c0_45 = arith.constant 0 : index
    %c0_46 = arith.constant 0 : index
    %55 = vector.load %arg2[%c0_43, %c3_44, %c0_45, %c0_46] : memref<1x8x1x128xf32, #tpu.memory_space<vmem>>, vector<1x1x1x128xf32>
    %56 = vector.shape_cast %55 : vector<1x1x1x128xf32> to vector<1x128xf32>
    %57 = arith.subf %56, %28 : vector<1x128xf32>
    %58 = math.exp %57 : vector<1x128xf32>
    %59 = arith.addf %51, %58 : vector<1x128xf32>
    %c3_i32 = arith.constant 3 : i32
    %60 = vector.broadcast %c3_i32 : i32 to vector<1x128xi32>
    %61 = arith.cmpi eq, %1, %60 : vector<1x128xi32>
    %62 = arith.select %61, %56, %54 : vector<1x128xi1>, vector<1x128xf32>
    %c0_47 = arith.constant 0 : index
    %c4_48 = arith.constant 4 : index
    %c0_49 = arith.constant 0 : index
    %c0_50 = arith.constant 0 : index
    %63 = vector.load %arg2[%c0_47, %c4_48, %c0_49, %c0_50] : memref<1x8x1x128xf32, #tpu.memory_space<vmem>>, vector<1x1x1x128xf32>
    %64 = vector.shape_cast %63 : vector<1x1x1x128xf32> to vector<1x128xf32>
    %65 = arith.subf %64, %28 : vector<1x128xf32>
    %66 = math.exp %65 : vector<1x128xf32>
    %67 = arith.addf %59, %66 : vector<1x128xf32>
    %c4_i32 = arith.constant 4 : i32
    %68 = vector.broadcast %c4_i32 : i32 to vector<1x128xi32>
    %69 = arith.cmpi eq, %1, %68 : vector<1x128xi32>
    %70 = arith.select %69, %64, %62 : vector<1x128xi1>, vector<1x128xf32>
    %c0_51 = arith.constant 0 : index
    %c5_52 = arith.constant 5 : index
    %c0_53 = arith.constant 0 : index
    %c0_54 = arith.constant 0 : index
    %71 = vector.load %arg2[%c0_51, %c5_52, %c0_53, %c0_54] : memref<1x8x1x128xf32, #tpu.memory_space<vmem>>, vector<1x1x1x128xf32>
    %72 = vector.shape_cast %71 : vector<1x1x1x128xf32> to vector<1x128xf32>
    %73 = arith.subf %72, %28 : vector<1x128xf32>
    %74 = math.exp %73 : vector<1x128xf32>
    %75 = arith.addf %67, %74 : vector<1x128xf32>
    %c5_i32 = arith.constant 5 : i32
    %76 = vector.broadcast %c5_i32 : i32 to vector<1x128xi32>
    %77 = arith.cmpi eq, %1, %76 : vector<1x128xi32>
    %78 = arith.select %77, %72, %70 : vector<1x128xi1>, vector<1x128xf32>
    %c0_55 = arith.constant 0 : index
    %c6_56 = arith.constant 6 : index
    %c0_57 = arith.constant 0 : index
    %c0_58 = arith.constant 0 : index
    %79 = vector.load %arg2[%c0_55, %c6_56, %c0_57, %c0_58] : memref<1x8x1x128xf32, #tpu.memory_space<vmem>>, vector<1x1x1x128xf32>
    %80 = vector.shape_cast %79 : vector<1x1x1x128xf32> to vector<1x128xf32>
    %81 = arith.subf %80, %28 : vector<1x128xf32>
    %82 = math.exp %81 : vector<1x128xf32>
    %83 = arith.addf %75, %82 : vector<1x128xf32>
    %c6_i32 = arith.constant 6 : i32
    %84 = vector.broadcast %c6_i32 : i32 to vector<1x128xi32>
    %85 = arith.cmpi eq, %1, %84 : vector<1x128xi32>
    %86 = arith.select %85, %80, %78 : vector<1x128xi1>, vector<1x128xf32>
    %c0_59 = arith.constant 0 : index
    %c7_60 = arith.constant 7 : index
    %c0_61 = arith.constant 0 : index
    %c0_62 = arith.constant 0 : index
    %87 = vector.load %arg2[%c0_59, %c7_60, %c0_61, %c0_62] : memref<1x8x1x128xf32, #tpu.memory_space<vmem>>, vector<1x1x1x128xf32>
    %88 = vector.shape_cast %87 : vector<1x1x1x128xf32> to vector<1x128xf32>
    %89 = arith.subf %88, %28 : vector<1x128xf32>
    %90 = math.exp %89 : vector<1x128xf32>
    %91 = arith.addf %83, %90 : vector<1x128xf32>
    %c7_i32 = arith.constant 7 : i32
    %92 = vector.broadcast %c7_i32 : i32 to vector<1x128xi32>
    %93 = arith.cmpi eq, %1, %92 : vector<1x128xi32>
    %94 = arith.select %93, %88, %86 : vector<1x128xi1>, vector<1x128xf32>
    %95 = math.log %91 : vector<1x128xf32>
    %96 = arith.addf %95, %28 : vector<1x128xf32>
    %97 = arith.subf %96, %94 : vector<1x128xf32>
    %cst_63 = arith.constant 0.000000e+00 : f32
    %98 = vector.broadcast %cst_63 : f32 to vector<1x128xf32>
    %99 = arith.select %3, %97, %98 : vector<1x128xi1>, vector<1x128xf32>
    %cst_64 = arith.constant 0.000000e+00 : f32
    %100 = vector.broadcast %cst_64 : f32 to vector<1x128xf32>
    %c0_65 = arith.constant 0 : index
    %c0_66 = arith.constant 0 : index
    %c0_67 = arith.constant 0 : index
    %c0_68 = arith.constant 0 : index
    %101 = vector.load %arg4[%c0_65, %c0_66, %c0_67, %c0_68] : memref<1x4x1x128xf32, #tpu.memory_space<vmem>>, vector<1x1x1x128xf32>
    %102 = vector.shape_cast %101 : vector<1x1x1x128xf32> to vector<1x128xf32>
    %c0_69 = arith.constant 0 : index
    %c0_70 = arith.constant 0 : index
    %c0_71 = arith.constant 0 : index
    %c0_72 = arith.constant 0 : index
    %103 = vector.load %arg5[%c0_69, %c0_70, %c0_71, %c0_72] : memref<1x4x1x128xf32, #tpu.memory_space<vmem>>, vector<1x1x1x128xf32>
    %104 = vector.shape_cast %103 : vector<1x1x1x128xf32> to vector<1x128xf32>
    %105 = arith.subf %102, %104 : vector<1x128xf32>
    %106 = math.absf %105 : vector<1x128xf32>
    %cst_73 = arith.constant 1.000000e+00 : f32
    %107 = vector.broadcast %cst_73 : f32 to vector<1x128xf32>
    %108 = arith.cmpf olt, %106, %107 : vector<1x128xf32>
    %cst_74 = arith.constant 5.000000e-01 : f32
    %109 = vector.broadcast %cst_74 : f32 to vector<1x128xf32>
    %110 = arith.mulf %109, %106 : vector<1x128xf32>
    %111 = arith.mulf %110, %106 : vector<1x128xf32>
    %cst_75 = arith.constant 5.000000e-01 : f32
    %112 = vector.broadcast %cst_75 : f32 to vector<1x128xf32>
    %113 = arith.subf %106, %112 : vector<1x128xf32>
    %114 = arith.select %108, %111, %113 : vector<1x128xi1>, vector<1x128xf32>
    %115 = arith.addf %100, %114 : vector<1x128xf32>
    %c0_76 = arith.constant 0 : index
    %c1_77 = arith.constant 1 : index
    %c0_78 = arith.constant 0 : index
    %c0_79 = arith.constant 0 : index
    %116 = vector.load %arg4[%c0_76, %c1_77, %c0_78, %c0_79] : memref<1x4x1x128xf32, #tpu.memory_space<vmem>>, vector<1x1x1x128xf32>
    %117 = vector.shape_cast %116 : vector<1x1x1x128xf32> to vector<1x128xf32>
    %c0_80 = arith.constant 0 : index
    %c1_81 = arith.constant 1 : index
    %c0_82 = arith.constant 0 : index
    %c0_83 = arith.constant 0 : index
    %118 = vector.load %arg5[%c0_80, %c1_81, %c0_82, %c0_83] : memref<1x4x1x128xf32, #tpu.memory_space<vmem>>, vector<1x1x1x128xf32>
    %119 = vector.shape_cast %118 : vector<1x1x1x128xf32> to vector<1x128xf32>
    %120 = arith.subf %117, %119 : vector<1x128xf32>
    %121 = math.absf %120 : vector<1x128xf32>
    %cst_84 = arith.constant 1.000000e+00 : f32
    %122 = vector.broadcast %cst_84 : f32 to vector<1x128xf32>
    %123 = arith.cmpf olt, %121, %122 : vector<1x128xf32>
    %cst_85 = arith.constant 5.000000e-01 : f32
    %124 = vector.broadcast %cst_85 : f32 to vector<1x128xf32>
    %125 = arith.mulf %124, %121 : vector<1x128xf32>
    %126 = arith.mulf %125, %121 : vector<1x128xf32>
    %cst_86 = arith.constant 5.000000e-01 : f32
    %127 = vector.broadcast %cst_86 : f32 to vector<1x128xf32>
    %128 = arith.subf %121, %127 : vector<1x128xf32>
    %129 = arith.select %123, %126, %128 : vector<1x128xi1>, vector<1x128xf32>
    %130 = arith.addf %115, %129 : vector<1x128xf32>
    %c0_87 = arith.constant 0 : index
    %c2_88 = arith.constant 2 : index
    %c0_89 = arith.constant 0 : index
    %c0_90 = arith.constant 0 : index
    %131 = vector.load %arg4[%c0_87, %c2_88, %c0_89, %c0_90] : memref<1x4x1x128xf32, #tpu.memory_space<vmem>>, vector<1x1x1x128xf32>
    %132 = vector.shape_cast %131 : vector<1x1x1x128xf32> to vector<1x128xf32>
    %c0_91 = arith.constant 0 : index
    %c2_92 = arith.constant 2 : index
    %c0_93 = arith.constant 0 : index
    %c0_94 = arith.constant 0 : index
    %133 = vector.load %arg5[%c0_91, %c2_92, %c0_93, %c0_94] : memref<1x4x1x128xf32, #tpu.memory_space<vmem>>, vector<1x1x1x128xf32>
    %134 = vector.shape_cast %133 : vector<1x1x1x128xf32> to vector<1x128xf32>
    %135 = arith.subf %132, %134 : vector<1x128xf32>
    %136 = math.absf %135 : vector<1x128xf32>
    %cst_95 = arith.constant 1.000000e+00 : f32
    %137 = vector.broadcast %cst_95 : f32 to vector<1x128xf32>
    %138 = arith.cmpf olt, %136, %137 : vector<1x128xf32>
    %cst_96 = arith.constant 5.000000e-01 : f32
    %139 = vector.broadcast %cst_96 : f32 to vector<1x128xf32>
    %140 = arith.mulf %139, %136 : vector<1x128xf32>
    %141 = arith.mulf %140, %136 : vector<1x128xf32>
    %cst_97 = arith.constant 5.000000e-01 : f32
    %142 = vector.broadcast %cst_97 : f32 to vector<1x128xf32>
    %143 = arith.subf %136, %142 : vector<1x128xf32>
    %144 = arith.select %138, %141, %143 : vector<1x128xi1>, vector<1x128xf32>
    %145 = arith.addf %130, %144 : vector<1x128xf32>
    %c0_98 = arith.constant 0 : index
    %c3_99 = arith.constant 3 : index
    %c0_100 = arith.constant 0 : index
    %c0_101 = arith.constant 0 : index
    %146 = vector.load %arg4[%c0_98, %c3_99, %c0_100, %c0_101] : memref<1x4x1x128xf32, #tpu.memory_space<vmem>>, vector<1x1x1x128xf32>
    %147 = vector.shape_cast %146 : vector<1x1x1x128xf32> to vector<1x128xf32>
    %c0_102 = arith.constant 0 : index
    %c3_103 = arith.constant 3 : index
    %c0_104 = arith.constant 0 : index
    %c0_105 = arith.constant 0 : index
    %148 = vector.load %arg5[%c0_102, %c3_103, %c0_104, %c0_105] : memref<1x4x1x128xf32, #tpu.memory_space<vmem>>, vector<1x1x1x128xf32>
    %149 = vector.shape_cast %148 : vector<1x1x1x128xf32> to vector<1x128xf32>
    %150 = arith.subf %147, %149 : vector<1x128xf32>
    %151 = math.absf %150 : vector<1x128xf32>
    %cst_106 = arith.constant 1.000000e+00 : f32
    %152 = vector.broadcast %cst_106 : f32 to vector<1x128xf32>
    %153 = arith.cmpf olt, %151, %152 : vector<1x128xf32>
    %cst_107 = arith.constant 5.000000e-01 : f32
    %154 = vector.broadcast %cst_107 : f32 to vector<1x128xf32>
    %155 = arith.mulf %154, %151 : vector<1x128xf32>
    %156 = arith.mulf %155, %151 : vector<1x128xf32>
    %cst_108 = arith.constant 5.000000e-01 : f32
    %157 = vector.broadcast %cst_108 : f32 to vector<1x128xf32>
    %158 = arith.subf %151, %157 : vector<1x128xf32>
    %159 = arith.select %153, %156, %158 : vector<1x128xi1>, vector<1x128xf32>
    %160 = arith.addf %145, %159 : vector<1x128xf32>
    %cst_109 = arith.constant 0.000000e+00 : f32
    %161 = vector.broadcast %cst_109 : f32 to vector<1x128xf32>
    %162 = arith.select %5, %160, %161 : vector<1x128xi1>, vector<1x128xf32>
    %cst_110 = arith.constant -1.000000e+30 : f32
    %163 = vector.broadcast %cst_110 : f32 to vector<1x128xf32>
    %164 = arith.select %3, %99, %163 : vector<1x128xi1>, vector<1x128xf32>
    %cst_111 = arith.constant 0.000000e+00 : f32
    %165 = vector.broadcast %cst_111 : f32 to vector<1x128xf32>
    %166 = arith.select %5, %165, %164 : vector<1x128xi1>, vector<1x128xf32>
    %167 = vector.shape_cast %166 : vector<1x128xf32> to vector<1x1x128xf32>
    %c0_112 = arith.constant 0 : index
    %c0_113 = arith.constant 0 : index
    %c0_114 = arith.constant 0 : index
    %168 = vector.load %arg6[%c0_112, %c0_113, %c0_114] : memref<1x1x128xf32, #tpu.memory_space<vmem>>, vector<1x1x128xf32>
    tpu.vector_store %arg6[%c0_112, %c0_113, %c0_114], %167 {strides = array<i32>} : memref<1x1x128xf32, #tpu.memory_space<vmem>>, vector<1x1x128xf32>,
    %169 = arith.extui %5 : vector<1x128xi1> to vector<1x128xi32>
    %170 = arith.sitofp %169 : vector<1x128xi32> to vector<1x128xf32>
    %cst_115 = arith.constant dense<0.000000e+00> : vector<128xf32>
    %171 = vector.multi_reduction <add>, %162, %cst_115 [0] : vector<1x128xf32> to vector<128xf32>
    %172 = vector.shape_cast %171 : vector<128xf32> to vector<1x128xf32>
    %cst_116 = arith.constant dense<0.000000e+00> : vector<128xf32>
    %173 = vector.multi_reduction <add>, %170, %cst_116 [0] : vector<1x128xf32> to vector<128xf32>
    %174 = vector.shape_cast %173 : vector<128xf32> to vector<1x128xf32>
    %cst_117 = arith.constant 0.000000e+00 : f32
    %175 = vector.broadcast %cst_117 : f32 to vector<1x128xf32>
    %176 = arith.select %5, %99, %175 : vector<1x128xi1>, vector<1x128xf32>
    %cst_118 = arith.constant dense<0.000000e+00> : vector<128xf32>
    %177 = vector.multi_reduction <add>, %176, %cst_118 [0] : vector<1x128xf32> to vector<128xf32>
    %178 = vector.shape_cast %177 : vector<128xf32> to vector<1x128xf32>
    %cst_119 = arith.constant 0.000000e+00 : f32
    %179 = vector.broadcast %cst_119 : f32 to vector<5x128xf32>
    %180 = tpu.concatenate %172, %174, %178, %179 in 0 : vector<1x128xf32>, vector<1x128xf32>, vector<1x128xf32>, vector<5x128xf32> -> vector<8x128xf32>
    %181 = vector.shape_cast %180 : vector<8x128xf32> to vector<1x1x8x128xf32>
    %c0_120 = arith.constant 0 : index
    %c0_121 = arith.constant 0 : index
    %c0_122 = arith.constant 0 : index
    %c0_123 = arith.constant 0 : index
    %182 = vector.load %arg7[%c0_120, %c0_121, %c0_122, %c0_123] : memref<1x1x8x128xf32, #tpu.memory_space<vmem>>, vector<1x1x8x128xf32>
    tpu.vector_store %arg7[%c0_120, %c0_121, %c0_122, %c0_123], %181 {strides = array<i32>} : memref<1x1x8x128xf32, #tpu.memory_space<vmem>>, vector<1x1x8x128xf32>,
    return
  }
  func.func @transform_0(%arg0: i32, %arg1: i32) -> (i32, i32, i32, i32) {
    %c0_i32 = arith.constant 0 : i32
    %c0_i32_0 = arith.constant 0 : i32
    %c0_i32_1 = arith.constant 0 : i32
    return %arg0, %c0_i32, %arg1, %c0_i32_0 : i32, i32, i32, i32
  }
  func.func @transform_1(%arg0: i32, %arg1: i32) -> (i32, i32, i32, i32) {
    %c0_i32 = arith.constant 0 : i32
    %c0_i32_0 = arith.constant 0 : i32
    %c0_i32_1 = arith.constant 0 : i32
    return %arg0, %c0_i32, %arg1, %c0_i32_0 : i32, i32, i32, i32
  }
  func.func @transform_2(%arg0: i32, %arg1: i32) -> (i32, i32, i32, i32) {
    %c0_i32 = arith.constant 0 : i32
    %c0_i32_0 = arith.constant 0 : i32
    %c0_i32_1 = arith.constant 0 : i32
    return %arg0, %c0_i32, %arg1, %c0_i32_0 : i32, i32, i32, i32
  }
  func.func @transform_3(%arg0: i32, %arg1: i32) -> (i32, i32, i32, i32) {
    %c0_i32 = arith.constant 0 : i32
    %c0_i32_0 = arith.constant 0 : i32
    %c0_i32_1 = arith.constant 0 : i32
    return %arg0, %c0_i32, %arg1, %c0_i32_0 : i32, i32, i32, i32
  }
  func.func @transform_4(%arg0: i32, %arg1: i32) -> (i32, i32, i32) {
    %c0_i32 = arith.constant 0 : i32
    %c0_i32_0 = arith.constant 0 : i32
    return %arg0, %arg1, %c0_i32 : i32, i32, i32
  }
  func.func @transform_5(%arg0: i32, %arg1: i32) -> (i32, i32, i32, i32) {
    %c0_i32 = arith.constant 0 : i32
    %c0_i32_0 = arith.constant 0 : i32
    %c0_i32_1 = arith.constant 0 : i32
    return %arg0, %arg1, %c0_i32, %c0_i32_0 : i32, i32, i32, i32
  }
}

</mosaic_0001>

<llo_original>
// kernel: tpu_custom_call.1
$region0: #{tpu_custom_call.1}
  #allocation0 [shape = 'u32[]', space=smem, size = 0x4, offset = 0x4, fixed_abs, tag = 'smem constant byte address 0x4 - core index']
  #allocation1 [shape = 'u32[144,128]{1,0:T(1,128)}', space=vmem, size = 0x12000, scoped, tag = 'internal scratch']
  %s0 = inlined_call_operand.hbm [shape: f32[6,8,1,128], index: 0, kind: input, shape index: {}]
  %s1 = inlined_call_operand.hbm [shape: s32[6,1,1,128], index: 1, kind: input, shape index: {}]
  %s2 = inlined_call_operand.hbm [shape: f32[6,4,1,128], index: 2, kind: input, shape index: {}]
  %s3 = inlined_call_operand.hbm [shape: f32[6,4,1,128], index: 3, kind: input, shape index: {}]
  %s4 = inlined_call_operand.hbm [shape: f32[6,1,128], index: 4, kind: output, shape index: {0}]
  %s5 = inlined_call_operand.hbm [shape: f32[6,1,8,128], index: 5, kind: output, shape index: {1}]
  %6 = xla_tuple %s4, %s5
  %s7 = sld [smem:[#allocation0]]
  $region73: #{tpu_custom_call.1} parent=0
    _
  %s9 = ssub.s32 1, %s7
  %s10 = scalar_select 0, %s9, %s7
  $region1: #{tpu_custom_call.1} parent=0
    #allocation2 [shape = 'u8[8192]{0}', space=vmem, size = 0x2000, scoped, tag = 'input window, operand 0']
    #allocation3 [shape = 's32[2]{0}', space=sflag, size = 0x8, scoped, tag = 'scoped memory for tpu_custom_call.1']
    #allocation4 [shape = 's32[2]{0}', space=sflag, size = 0x8, scoped, tag = 'scoped memory for tpu_custom_call.1']
    #allocation5 [shape = 'u8[1024]{0}', space=vmem, size = 0x400, scoped, tag = 'input window, operand 1']
    #allocation6 [shape = 's32[2]{0}', space=sflag, size = 0x8, scoped, tag = 'scoped memory for tpu_custom_call.1']
    #allocation7 [shape = 'u8[4096]{0}', space=vmem, size = 0x1000, scoped, tag = 'input window, operand 2']
    #allocation8 [shape = 'u8[4096]{0}', space=vmem, size = 0x1000, scoped, tag = 'input window, operand 3']
    #allocation9 [shape = 's32[2]{0}', space=sflag, size = 0x8, scoped, tag = 'scoped memory for tpu_custom_call.1']
    #allocation10 [shape = 'u8[1024]{0}', space=vmem, size = 0x400, scoped, tag = 'output window, operand 0']
    #allocation11 [shape = 'u8[8192]{0}', space=vmem, size = 0x2000, scoped, tag = 'output window, operand 1']
    #allocation12 [shape = 's32[2]{0}', space=sflag, size = 0x8, scoped, tag = 'scoped memory for tpu_custom_call.1']
    %11 = vsyncpa [#allocation3], 0
    %s12 = scalar_lea.sflag [#allocation3], 1
    %13 = vsyncpa %s12, 0
    %14 = vsyncpa [#allocation6], 0
    %s15 = scalar_lea.sflag [#allocation6], 1
    %16 = vsyncpa %s15, 0
    %17 = vsyncpa [#allocation9], 0
    %s18 = scalar_lea.sflag [#allocation9], 1
    %19 = vsyncpa %s18, 0
    %20 = vsyncpa [#allocation4], 0
    %s21 = scalar_lea.sflag [#allocation4], 1
    %22 = vsyncpa %s21, 0
    %23 = vsyncpa [#allocation12], 0
    %s24 = scalar_lea.sflag [#allocation12], 1
    %25 = vsyncpa %s24, 0
    loop: start=0, step=1, limit=8
    $region2: #{tpu_custom_call.1} parent=1 // loop_pre_header
      _
    $region3: #{tpu_custom_call.1} parent=1 // loop_header
      %s27 = sphi 0, %s31
      %p28 = scmp.ge.s32.totalorder %s27, 8
      %s34 = sphi 0, %s46
      %s35 = sphi 0, %s42
      %s36 = sphi 0, %s34
      %s37 = sphi 0, %s35
      %s38 = sphi 0, %s36
      %s39 = sphi 0, %s37
      %s51 = sphi 0, %s53
      %s54 = sphi 0, %s51
      %s55 = sphi 0, %s54
      %s71 = sphi 0, %s55
      %s79 = sphi 0, %s81
      %s82 = sphi 0, %s79
      %s83 = sphi 0, %s82
      %s99 = sphi 0, %s83
      %s107 = sphi 0, %s109
      %s110 = sphi 0, %s107
      %s111 = sphi 0, %s110
      %s127 = sphi 0, %s111
      %s135 = sphi 0, %s137
      %s138 = sphi 0, %s135
      %s139 = sphi 0, %s138
      %s155 = sphi 0, %s139
      %s163 = sphi 0, %s165
      %s166 = sphi 0, %s163
      %s167 = sphi 0, %s166
      %s183 = sphi 0, %s167
      %s191 = sphi 0, %s193
      %s194 = sphi 0, %s191
      %s195 = sphi 0, %s194
      %s211 = sphi 0, %s195
    $region4: #{tpu_custom_call.1} parent=1 // loop_header_branch
      %30 = sbr.rel (%p28) target = $region8
    $region5: #{tpu_custom_call.1} parent=1 // loop_body
      %s32 = ssub.s32 %s27, 1
      %s33 = ssub.s32 %s27, 2
      %s40 = sadd.s32 1, %s35
      %p41 = scmp.ge.s32.totalorder %s40, 1
      %s42 = scalar_select %p41, 0, %s40
      %s43 = sadd.s32 1, %s34
      %s44 = scalar_select %p41, %s43, %s34
      %p45 = scmp.ge.s32.totalorder %s44, 6
      %s46 = scalar_select %p45, 0, %s44
      %s47 = ssub.s32 %s34, %s46
      %s48 = ssub.s32 %s35, %s42
      %s49 = sor.u32 %s47, %s48
      %p50 = scmp.eq.s32.totalorder %s49, 0
      %s52 = sadd.s32 %s51, 1
      %s53 = scalar_select %p50, %s51, %s52
      %p56 = pneg %p50
      %p57 = scmp.eq.s32.totalorder %s27, 5
      %p58 = por %p56, %p57
      %p59 = scmp.ne.s32.totalorder %s51, %s54
      %p60 = scmp.eq.s32.totalorder %s27, 0
      %p61 = por %p59, %p60
      %p62 = scmp.ne.s32.totalorder %s51, %s54
      %p63 = scmp.eq.s32.totalorder %s32, 5
      %p64 = por %p62, %p63
      %p65 = scmp.ne.s32.totalorder %s54, %s55
      %p66 = scmp.eq.s32.totalorder %s32, 0
      %p67 = por %p65, %p66
      %p68 = scmp.ne.s32.totalorder %s54, %s55
      %p69 = scmp.eq.s32.totalorder %s33, 5
      %p70 = por %p68, %p69
      %p72 = scmp.ne.s32.totalorder %s55, %s71
      %p73 = scmp.eq.s32.totalorder %s33, 0
      %p74 = por %p72, %p73
      %s75 = ssub.s32 %s34, %s46
      %s76 = ssub.s32 %s35, %s42
      %s77 = sor.u32 %s75, %s76
      %p78 = scmp.eq.s32.totalorder %s77, 0
      %s80 = sadd.s32 %s79, 1
      %s81 = scalar_select %p78, %s79, %s80
      %p84 = pneg %p78
      %p85 = scmp.eq.s32.totalorder %s27, 5
      %p86 = por %p84, %p85
      %p87 = scmp.ne.s32.totalorder %s79, %s82
      %p88 = scmp.eq.s32.totalorder %s27, 0
      %p89 = por %p87, %p88
      %p90 = scmp.ne.s32.totalorder %s79, %s82
      %p91 = scmp.eq.s32.totalorder %s32, 5
      %p92 = por %p90, %p91
      %p93 = scmp.ne.s32.totalorder %s82, %s83
      %p94 = scmp.eq.s32.totalorder %s32, 0
      %p95 = por %p93, %p94
      %p96 = scmp.ne.s32.totalorder %s82, %s83
      %p97 = scmp.eq.s32.totalorder %s33, 5
      %p98 = por %p96, %p97
      %p100 = scmp.ne.s32.totalorder %s83, %s99
      %p101 = scmp.eq.s32.totalorder %s33, 0
      %p102 = por %p100, %p101
      %s103 = ssub.s32 %s34, %s46
      %s104 = ssub.s32 %s35, %s42
      %s105 = sor.u32 %s103, %s104
      %p106 = scmp.eq.s32.totalorder %s105, 0
      %s108 = sadd.s32 %s107, 1
      %s109 = scalar_select %p106, %s107, %s108
      %p112 = pneg %p106
      %p113 = scmp.eq.s32.totalorder %s27, 5
      %p114 = por %p112, %p113
      %p115 = scmp.ne.s32.totalorder %s107, %s110
      %p116 = scmp.eq.s32.totalorder %s27, 0
      %p117 = por %p115, %p116
      %p118 = scmp.ne.s32.totalorder %s107, %s110
      %p119 = scmp.eq.s32.totalorder %s32, 5
      %p120 = por %p118, %p119
      %p121 = scmp.ne.s32.totalorder %s110, %s111
      %p122 = scmp.eq.s32.totalorder %s32, 0
      %p123 = por %p121, %p122
      %p124 = scmp.ne.s32.totalorder %s110, %s111
      %p125 = scmp.eq.s32.totalorder %s33, 5
      %p126 = por %p124, %p125
      %p128 = scmp.ne.s32.totalorder %s111, %s127
      %p129 = scmp.eq.s32.totalorder %s33, 0
      %p130 = por %p128, %p129
      %s131 = ssub.s32 %s34, %s46
      %s132 = ssub.s32 %s35, %s42
      %s133 = sor.u32 %s131, %s132
      %p134 = scmp.eq.s32.totalorder %s133, 0
      %s136 = sadd.s32 %s135, 1
      %s137 = scalar_select %p134, %s135, %s136
      %p140 = pneg %p134
      %p141 = scmp.eq.s32.totalorder %s27, 5
      %p142 = por %p140, %p141
      %p143 = scmp.ne.s32.totalorder %s135, %s138
      %p144 = scmp.eq.s32.totalorder %s27, 0
      %p145 = por %p143, %p144
      %p146 = scmp.ne.s32.totalorder %s135, %s138
      %p147 = scmp.eq.s32.totalorder %s32, 5
      %p148 = por %p146, %p147
      %p149 = scmp.ne.s32.totalorder %s138, %s139
      %p150 = scmp.eq.s32.totalorder %s32, 0
      %p151 = por %p149, %p150
      %p152 = scmp.ne.s32.totalorder %s138, %s139
      %p153 = scmp.eq.s32.totalorder %s33, 5
      %p154 = por %p152, %p153
      %p156 = scmp.ne.s32.totalorder %s139, %s155
      %p157 = scmp.eq.s32.totalorder %s33, 0
      %p158 = por %p156, %p157
      %s159 = ssub.s32 %s34, %s46
      %s160 = ssub.s32 %s35, %s42
      %s161 = sor.u32 %s159, %s160
      %p162 = scmp.eq.s32.totalorder %s161, 0
      %s164 = sadd.s32 %s163, 1
      %s165 = scalar_select %p162, %s163, %s164
      %p168 = pneg %p162
      %p169 = scmp.eq.s32.totalorder %s27, 5
      %p170 = por %p168, %p169
      %p171 = scmp.ne.s32.totalorder %s163, %s166
      %p172 = scmp.eq.s32.totalorder %s27, 0
      %p173 = por %p171, %p172
      %p174 = scmp.ne.s32.totalorder %s163, %s166
      %p175 = scmp.eq.s32.totalorder %s32, 5
      %p176 = por %p174, %p175
      %p177 = scmp.ne.s32.totalorder %s166, %s167
      %p178 = scmp.eq.s32.totalorder %s32, 0
      %p179 = por %p177, %p178
      %p180 = scmp.ne.s32.totalorder %s166, %s167
      %p181 = scmp.eq.s32.totalorder %s33, 5
      %p182 = por %p180, %p181
      %p184 = scmp.ne.s32.totalorder %s167, %s183
      %p185 = scmp.eq.s32.totalorder %s33, 0
      %p186 = por %p184, %p185
      %s187 = ssub.s32 %s34, %s46
      %s188 = ssub.s32 %s35, %s42
      %s189 = sor.u32 %s187, %s188
      %p190 = scmp.eq.s32.totalorder %s189, 0
      %s192 = sadd.s32 %s191, 1
      %s193 = scalar_select %p190, %s191, %s192
      %p196 = pneg %p190
      %p197 = scmp.eq.s32.totalorder %s27, 5
      %p198 = por %p196, %p197
      %p199 = scmp.ne.s32.totalorder %s191, %s194
      %p200 = scmp.eq.s32.totalorder %s27, 0
      %p201 = por %p199, %p200
      %p202 = scmp.ne.s32.totalorder %s191, %s194
      %p203 = scmp.eq.s32.totalorder %s32, 5
      %p204 = por %p202, %p203
      %p205 = scmp.ne.s32.totalorder %s194, %s195
      %p206 = scmp.eq.s32.totalorder %s32, 0
      %p207 = por %p205, %p206
      %p208 = scmp.ne.s32.totalorder %s194, %s195
      %p209 = scmp.eq.s32.totalorder %s33, 5
      %p210 = por %p208, %p209
      %p212 = scmp.ne.s32.totalorder %s195, %s211
      %p213 = scmp.eq.s32.totalorder %s33, 0
      %p214 = por %p212, %p213
      %p215 = scmp.le.s32.totalorder 1, %s27
      %p216 = scmp.lt.s32.totalorder %s27, 7
      %p217 = pnand %p215, %p216
      %p218 = pneg %p217
      // Predicated region
      $region9: #{tpu_custom_call.1} parent=5 // pred_check
        _
      $region10: #{tpu_custom_call.1} parent=5 // pred_check_branch
        %220 = sbr.rel (%p217) target = $region12
      $region11: #{tpu_custom_call.1} parent=5 // pred_region
        %s221 = ssub.s32 %s27, 1
      $region12: #{tpu_custom_call.1} parent=5 // pred_fallthru
        _
      %p222 = scmp.lt.s32.totalorder %s27, 6
      // Predicated region
      $region13: #{tpu_custom_call.1} parent=5 // pred_check
        %p223 = pneg %p222
      $region14: #{tpu_custom_call.1} parent=5 // pred_check_branch
        %225 = sbr.rel (%p223) target = $region16
      $region15: #{tpu_custom_call.1} parent=5 // pred_region
        // Predicated region
        $region17: #{tpu_custom_call.1} parent=15 // pred_check
          %p226 = pneg %p61
        $region18: #{tpu_custom_call.1} parent=15 // pred_check_branch
          %228 = sbr.rel (%p226) target = $region20
        $region19: #{tpu_custom_call.1} parent=15 // pred_region
          %s229 = sand.u32 %s51, 1
          %s230 = scalar_lea.sflag [#allocation3], %s229
          %s231 = sand.u32 %s51, 1
          %s232 = smul.addr %s231, 8
          %s233 = scalar_lea.vmem [#allocation2], %s232
          %s235 = ssub.s32 128, 128
          %236 = vsyncadd %s230, %s235
          %s237 = smul.addr %s34, 8
          %s238 = sadd.s32 %s35, %s237
          %s239 = smul.addr %s238, 16
          %s240 = scalar_lea.hbm %s0, %s239
          %s241 = sshll.u32 %s233, 4
          %s242 = int_to_ptr.vmem [resolvable:$true] %s241
          %247 = dma.hbm_to_vmem [thread:$0]  %s240, 128, %s242, %s230, 16, 16, 1
        $region20: #{tpu_custom_call.1} parent=15 // pred_fallthru
          _
        // Predicated region
        $region21: #{tpu_custom_call.1} parent=15 // pred_check
          %p248 = pneg %p89
        $region22: #{tpu_custom_call.1} parent=15 // pred_check_branch
          %250 = sbr.rel (%p248) target = $region24
        $region23: #{tpu_custom_call.1} parent=15 // pred_region
          %s251 = sand.u32 %s27, 1
          %s252 = scalar_lea.sflag [#allocation6], %s251
          %s253 = sand.u32 %s79, 1
          %s254 = scalar_lea.vmem [#allocation5], %s253
          %s256 = ssub.s32 16, 16
          %257 = vsyncadd %s252, %s256
          %s258 = sadd.s32 %s35, %s34
          %s259 = smul.addr %s258, 16
          %s260 = scalar_lea.hbm %s1, %s259
          %s262 = sshll.u32 %s254, 4
          %s263 = int_to_ptr.vmem [resolvable:$true] %s262
          %265 = dma.hbm_to_vmem [thread:$0]  %s260, 16, %s263, %s252
        $region24: #{tpu_custom_call.1} parent=15 // pred_fallthru
          _
        // Predicated region
        $region25: #{tpu_custom_call.1} parent=15 // pred_check
          %p266 = pneg %p117
        $region26: #{tpu_custom_call.1} parent=15 // pred_check_branch
          %268 = sbr.rel (%p266) target = $region28
        $region27: #{tpu_custom_call.1} parent=15 // pred_region
          %s269 = sand.u32 %s27, 1
          %s270 = scalar_lea.sflag [#allocation6], %s269
          %s271 = sand.u32 %s107, 1
          %s272 = smul.addr %s271, 4
          %s273 = scalar_lea.vmem [#allocation7], %s272
          %s275 = ssub.s32 64, 64
          %276 = vsyncadd %s270, %s275
          %s277 = smul.addr %s34, 4
          %s278 = sadd.s32 %s35, %s277
          %s279 = smul.addr %s278, 16
          %s280 = scalar_lea.hbm %s2, %s279
          %s281 = sshll.u32 %s273, 4
          %s282 = int_to_ptr.vmem [resolvable:$true] %s281
          %287 = dma.hbm_to_vmem [thread:$0]  %s280, 64, %s282, %s270, 16, 16, 1
        $region28: #{tpu_custom_call.1} parent=15 // pred_fallthru
          _
        // Predicated region
        $region29: #{tpu_custom_call.1} parent=15 // pred_check
          %p288 = pneg %p145
        $region30: #{tpu_custom_call.1} parent=15 // pred_check_branch
          %290 = sbr.rel (%p288) target = $region32
        $region31: #{tpu_custom_call.1} parent=15 // pred_region
          %s291 = sand.u32 %s135, 1
          %s292 = scalar_lea.sflag [#allocation9], %s291
          %s293 = sand.u32 %s135, 1
          %s294 = smul.addr %s293, 4
          %s295 = scalar_lea.vmem [#allocation8], %s294
          %s297 = ssub.s32 64, 64
          %298 = vsyncadd %s292, %s297
          %s299 = smul.addr %s34, 4
          %s300 = sadd.s32 %s35, %s299
          %s301 = smul.addr %s300, 16
          %s302 = scalar_lea.hbm %s3, %s301
          %s303 = sshll.u32 %s295, 4
          %s304 = int_to_ptr.vmem [resolvable:$true] %s303
          %309 = dma.hbm_to_vmem [thread:$0]  %s302, 64, %s304, %s292, 16, 16, 1
        $region32: #{tpu_custom_call.1} parent=15 // pred_fallthru
          _
      $region16: #{tpu_custom_call.1} parent=5 // pred_fallthru
        _
      %p310 = scmp.le.s32.totalorder 1, %s27
      %p311 = scmp.lt.s32.totalorder %s27, 7
      %p312 = pnand %p310, %p311
      %p313 = pneg %p312
      // Predicated region
      $region33: #{tpu_custom_call.1} parent=5 // pred_check
        _
      $region34: #{tpu_custom_call.1} parent=5 // pred_check_branch
        %315 = sbr.rel (%p312) target = $region36
      $region35: #{tpu_custom_call.1} parent=5 // pred_region
        %s316 = ssub.s32 %s27, 1
        %s317 = sand.u32 %s54, 1
        %s318 = scalar_lea.sflag [#allocation3], %s317
        %s319 = sand.u32 %s54, 1
        %s320 = smul.addr %s319, 8
        %s321 = scalar_lea.vmem [#allocation2], %s320
        // Predicated region
        $region37: #{tpu_custom_call.1} parent=35 // pred_check
          %p322 = pneg %p67
        $region38: #{tpu_custom_call.1} parent=35 // pred_check_branch
          %324 = sbr.rel (%p322) target = $region40
        $region39: #{tpu_custom_call.1} parent=35 // pred_region
          %325 = dma.done %s318, 128
        $region40: #{tpu_custom_call.1} parent=35 // pred_fallthru
          _
        %s326 = sand.u32 %s32, 1
        %s327 = scalar_lea.sflag [#allocation6], %s326
        %s328 = sand.u32 %s82, 1
        %s329 = scalar_lea.vmem [#allocation5], %s328
        // Predicated region
        $region41: #{tpu_custom_call.1} parent=35 // pred_check
          %p330 = pneg %p95
        $region42: #{tpu_custom_call.1} parent=35 // pred_check_branch
          %332 = sbr.rel (%p330) target = $region44
        $region43: #{tpu_custom_call.1} parent=35 // pred_region
          %333 = dma.done %s327, 16
        $region44: #{tpu_custom_call.1} parent=35 // pred_fallthru
          _
        %s334 = sand.u32 %s32, 1
        %s335 = scalar_lea.sflag [#allocation6], %s334
        %s336 = sand.u32 %s110, 1
        %s337 = smul.addr %s336, 4
        %s338 = scalar_lea.vmem [#allocation7], %s337
        // Predicated region
        $region45: #{tpu_custom_call.1} parent=35 // pred_check
          %p339 = pneg %p123
        $region46: #{tpu_custom_call.1} parent=35 // pred_check_branch
          %341 = sbr.rel (%p339) target = $region48
        $region47: #{tpu_custom_call.1} parent=35 // pred_region
          %342 = dma.done %s335, 64
        $region48: #{tpu_custom_call.1} parent=35 // pred_fallthru
          _
        %s343 = sand.u32 %s138, 1
        %s344 = scalar_lea.sflag [#allocation9], %s343
        %s345 = sand.u32 %s138, 1
        %s346 = smul.addr %s345, 4
        %s347 = scalar_lea.vmem [#allocation8], %s346
        // Predicated region
        $region49: #{tpu_custom_call.1} parent=35 // pred_check
          %p348 = pneg %p151
        $region50: #{tpu_custom_call.1} parent=35 // pred_check_branch
          %350 = sbr.rel (%p348) target = $region52
        $region51: #{tpu_custom_call.1} parent=35 // pred_region
          %351 = dma.done %s344, 64
        $region52: #{tpu_custom_call.1} parent=35 // pred_fallthru
          _
        %s352 = sand.u32 %s54, 1
        %s353 = scalar_lea.sflag [#allocation3], %s352
        %s354 = sand.u32 %s54, 1
        %s355 = smul.addr %s354, 8
        %s356 = scalar_lea.vmem [#allocation2], %s355
        %p357 = pneg %p67
        %p358 = pneg %p64
        %s359 = sand.u32 %s32, 1
        %s360 = scalar_lea.sflag [#allocation6], %s359
        %s361 = sand.u32 %s82, 1
        %s362 = scalar_lea.vmem [#allocation5], %s361
        %p363 = pneg %p95
        %p364 = pneg %p92
        %s365 = sand.u32 %s32, 1
        %s366 = scalar_lea.sflag [#allocation6], %s365
        %s367 = sand.u32 %s110, 1
        %s368 = smul.addr %s367, 4
        %s369 = scalar_lea.vmem [#allocation7], %s368
        %p370 = pneg %p123
        %p371 = pneg %p120
        %s372 = sand.u32 %s138, 1
        %s373 = scalar_lea.sflag [#allocation9], %s372
        %s374 = sand.u32 %s138, 1
        %s375 = smul.addr %s374, 4
        %s376 = scalar_lea.vmem [#allocation8], %s375
        %p377 = pneg %p151
        %p378 = pneg %p148
        %p379 = pneg %p179
        %p380 = pneg %p176
        %s381 = sand.u32 %s166, 1
        %s382 = scalar_lea.sflag [#allocation4], %s381
        %s383 = sand.u32 %s166, 1
        %s384 = scalar_lea.vmem [#allocation10], %s383
        %p385 = pneg %p207
        %p386 = pneg %p204
        %s387 = sand.u32 %s194, 1
        %s388 = scalar_lea.sflag [#allocation12], %s387
        %s389 = sand.u32 %s194, 1
        %s390 = smul.addr %s389, 8
        %s391 = scalar_lea.vmem [#allocation11], %s390
        %v392 = vld [vmem:[%s329] sm:$0x1]
        %vm393 = vcmp.ge.s32.totalorder %v392, 0
        %vm394 = vcmp.gt.s32.totalorder %v392, 0
        %v395 = vld [vmem:[%s321] sm:$0x1]
        %s396 = scalar_lea.vmem %s321, 1 [#allocation2]
        %v397 = vld [vmem:[%s396] sm:$0x1]
        %v398 = vmax.f32 %v395, %v397
        %s399 = scalar_lea.vmem %s321, 2 [#allocation2]
        %v400 = vld [vmem:[%s399] sm:$0x1]
        %v401 = vmax.f32 %v398, %v400
        %s402 = scalar_lea.vmem %s321, 3 [#allocation2]
        %v403 = vld [vmem:[%s402] sm:$0x1]
        %v404 = vmax.f32 %v401, %v403
        %s405 = scalar_lea.vmem %s321, 4 [#allocation2]
        %v406 = vld [vmem:[%s405] sm:$0x1]
        %v407 = vmax.f32 %v404, %v406
        %s408 = scalar_lea.vmem %s321, 5 [#allocation2]
        %v409 = vld [vmem:[%s408] sm:$0x1]
        %v410 = vmax.f32 %v407, %v409
        %s411 = scalar_lea.vmem %s321, 6 [#allocation2]
        %v412 = vld [vmem:[%s411] sm:$0x1]
        %v413 = vmax.f32 %v410, %v412
        %s414 = scalar_lea.vmem %s321, 7 [#allocation2]
        %v415 = vld [vmem:[%s414] sm:$0x1]
        %v416 = vmax.f32 %v413, %v415
        %v417 = vsub.f32 %v395, %v416
        %v418 = vmul.f32 %v417, 1.442695
        %v419 = vpow.pop %v418
        %v420 = vadd.f32 %v419, 0.0
        %vm421 = vcmp.eq.s32.totalorder %v392, 0
        %v422 = vsel %vm421, %v395, 0.0
        %v423 = vsub.f32 %v397, %v416
        %v424 = vmul.f32 %v423, 1.442695
        %v425 = vpow.pop %v424
        %v426 = vadd.f32 %v420, %v425
        %vm427 = vcmp.eq.s32.totalorder %v392, 1
        %v428 = vsel %vm427, %v397, %v422
        %v429 = vsub.f32 %v400, %v416
        %v430 = vmul.f32 %v429, 1.442695
        %v431 = vpow.pop %v430
        %v432 = vadd.f32 %v426, %v431
        %vm433 = vcmp.eq.s32.totalorder %v392, 2
        %v434 = vsel %vm433, %v400, %v428
        %v435 = vsub.f32 %v403, %v416
        %v436 = vmul.f32 %v435, 1.442695
        %v437 = vpow.pop %v436
        %v438 = vadd.f32 %v432, %v437
        %vm439 = vcmp.eq.s32.totalorder %v392, 3
        %v440 = vsel %vm439, %v403, %v434
        %v441 = vsub.f32 %v406, %v416
        %v442 = vmul.f32 %v441, 1.442695
        %v443 = vpow.pop %v442
        %v444 = vadd.f32 %v438, %v443
        %vm445 = vcmp.eq.s32.totalorder %v392, 4
        %v446 = vsel %vm445, %v406, %v440
        %v447 = vsub.f32 %v409, %v416
        %v448 = vmul.f32 %v447, 1.442695
        %v449 = vpow.pop %v448
        %v450 = vadd.f32 %v444, %v449
        %vm451 = vcmp.eq.s32.totalorder %v392, 5
        %v452 = vsel %vm451, %v409, %v446
        %v453 = vsub.f32 %v412, %v416
        %v454 = vmul.f32 %v453, 1.442695
        %v455 = vpow.pop %v454
        %v456 = vadd.f32 %v450, %v455
        %vm457 = vcmp.eq.s32.totalorder %v392, 6
        %v458 = vsel %vm457, %v412, %v452
        %v459 = vsub.f32 %v415, %v416
        %v460 = vmul.f32 %v459, 1.442695
        %v461 = vpow.pop %v460
        %v462 = vadd.f32 %v456, %v461
        %vm463 = vcmp.eq.s32.totalorder %v392, 7
        %v464 = vsel %vm463, %v415, %v458
        %v465 = vlog2.pop %v462
        %v466 = vmul.f32 %v465, 0.6931472
        %v467 = vadd.f32 %v466, %v416
        %v468 = vsub.f32 %v467, %v464
        %v469 = vsel %vm393, %v468, 0.0
        %v470 = vld [vmem:[%s338] sm:$0x1]
        %v471 = vld [vmem:[%s347] sm:$0x1]
        %v472 = vsub.f32 %v470, %v471
        %v473 = vand.u32 2147483647, %v472
        %vm474 = vcmp.lt.f32.partialorder %v473, 1.0
        %v475 = vmul.f32 %v473, 0.5
        %v476 = vmul.f32 %v475, %v473
        %v477 = vsub.f32 %v473, 0.5
        %v478 = vsel %vm474, %v476, %v477
        %v479 = vadd.f32 %v478, 0.0
        %s480 = scalar_lea.vmem %s338, 1 [#allocation7]
        %v481 = vld [vmem:[%s480] sm:$0x1]
        %s482 = scalar_lea.vmem %s347, 1 [#allocation8]
        %v483 = vld [vmem:[%s482] sm:$0x1]
        %v484 = vsub.f32 %v481, %v483
        %v485 = vand.u32 2147483647, %v484
        %vm486 = vcmp.lt.f32.partialorder %v485, 1.0
        %v487 = vmul.f32 %v485, 0.5
        %v488 = vmul.f32 %v487, %v485
        %v489 = vsub.f32 %v485, 0.5
        %v490 = vsel %vm486, %v488, %v489
        %v491 = vadd.f32 %v479, %v490
        %s492 = scalar_lea.vmem %s338, 2 [#allocation7]
        %v493 = vld [vmem:[%s492] sm:$0x1]
        %s494 = scalar_lea.vmem %s347, 2 [#allocation8]
        %v495 = vld [vmem:[%s494] sm:$0x1]
        %v496 = vsub.f32 %v493, %v495
        %v497 = vand.u32 2147483647, %v496
        %vm498 = vcmp.lt.f32.partialorder %v497, 1.0
        %v499 = vmul.f32 %v497, 0.5
        %v500 = vmul.f32 %v499, %v497
        %v501 = vsub.f32 %v497, 0.5
        %v502 = vsel %vm498, %v500, %v501
        %v503 = vadd.f32 %v491, %v502
        %s504 = scalar_lea.vmem %s338, 3 [#allocation7]
        %v505 = vld [vmem:[%s504] sm:$0x1]
        %s506 = scalar_lea.vmem %s347, 3 [#allocation8]
        %v507 = vld [vmem:[%s506] sm:$0x1]
        %v508 = vsub.f32 %v505, %v507
        %v509 = vand.u32 2147483647, %v508
        %vm510 = vcmp.lt.f32.partialorder %v509, 1.0
        %v511 = vmul.f32 %v509, 0.5
        %v512 = vmul.f32 %v511, %v509
        %v513 = vsub.f32 %v509, 0.5
        %v514 = vsel %vm510, %v512, %v513
        %v515 = vadd.f32 %v503, %v514
        %v516 = vsel %vm394, %v515, 0.0
        %v517 = vsel %vm393, %v468, -1e+30
        %v518 = vsel %vm394, 0.0, %v517
        %519 = vst [vmem:[%s384] sm:$0x1] %v518
        %v520 = vsel %vm394, 1, 0
        %v521 = vcvt.s32.f32 %v520
        %v522 = vadd.f32 %v516, 0.0
        %v523 = vadd.f32 %v521, 0.0
        %v524 = vsel %vm394, %v469, 0.0
        %v525 = vadd.f32 %v524, 0.0
        %v527 = vlaneseq
        %v528 = vshrl.u32 %v527, 7
        %v529 = vsub.s32 0, %v528
        %v530 = vrot.slane %v523, %v529
        %v533 = vlaneseq
        %v534 = vshrl.u32 %v533, 7
        %v535 = vsub.s32 0, %v534
        %v536 = vrot.slane %v525, %v535
        %vm538 = vcmask 1040384
        %v539 = vsel %vm538, %v522, %v530
        %vm540 = vcmask 1041408
        %v541 = vsel %vm540, %v539, %v536
        %vm542 = vcmask 1042432
        %v543 = vsel %vm542, %v541, 0.0
        %544 = vst [vmem:[%s391] sm:$0xff] %v543
        %s545 = sand.u32 %s166, 1
        %s546 = scalar_lea.sflag [#allocation4], %s545
        %s547 = sand.u32 %s166, 1
        %s548 = scalar_lea.vmem [#allocation10], %s547
        %s549 = sand.u32 %s194, 1
        %s550 = scalar_lea.sflag [#allocation12], %s549
        %s551 = sand.u32 %s194, 1
        %s552 = smul.addr %s551, 8
        %s553 = scalar_lea.vmem [#allocation11], %s552
        // Predicated region
        $region53: #{tpu_custom_call.1} parent=35 // pred_check
          %p554 = pneg %p176
        $region54: #{tpu_custom_call.1} parent=35 // pred_check_branch
          %556 = sbr.rel (%p554) target = $region56
        $region55: #{tpu_custom_call.1} parent=35 // pred_region
          %s558 = ssub.s32 16, 16
          %559 = vsyncadd %s546, %s558
          %s560 = sadd.s32 %s37, %s36
          %s561 = smul.addr %s560, 16
          %s562 = scalar_lea.hbm %s4, %s561
          %s564 = sshll.u32 %s548, 4
          %s565 = int_to_ptr.vmem [resolvable:$true] %s564
          %567 = dma.vmem_to_hbm [thread:$0]  %s565, 16, %s562, %s546
        $region56: #{tpu_custom_call.1} parent=35 // pred_fallthru
          _
        // Predicated region
        $region57: #{tpu_custom_call.1} parent=35 // pred_check
          %p568 = pneg %p204
        $region58: #{tpu_custom_call.1} parent=35 // pred_check_branch
          %570 = sbr.rel (%p568) target = $region60
        $region59: #{tpu_custom_call.1} parent=35 // pred_region
          %s572 = ssub.s32 128, 128
          %573 = vsyncadd %s550, %s572
          %s574 = sadd.s32 %s37, %s36
          %s575 = smul.addr %s574, 128
          %s576 = scalar_lea.hbm %s5, %s575
          %s578 = sshll.u32 %s553, 4
          %s579 = int_to_ptr.vmem [resolvable:$true] %s578
          %581 = dma.vmem_to_hbm [thread:$0]  %s579, 128, %s576, %s550
        $region60: #{tpu_custom_call.1} parent=35 // pred_fallthru
          _
      $region36: #{tpu_custom_call.1} parent=5 // pred_fallthru
        _
      %p582 = scmp.le.s32.totalorder 2, %s27
      // Predicated region
      $region61: #{tpu_custom_call.1} parent=5 // pred_check
        %p583 = pneg %p582
      $region62: #{tpu_custom_call.1} parent=5 // pred_check_branch
        %585 = sbr.rel (%p583) target = $region64
      $region63: #{tpu_custom_call.1} parent=5 // pred_region
        %s586 = ssub.s32 %s27, 2
        // Predicated region
        $region65: #{tpu_custom_call.1} parent=63 // pred_check
          %p587 = pneg %p182
        $region66: #{tpu_custom_call.1} parent=63 // pred_check_branch
          %589 = sbr.rel (%p587) target = $region68
        $region67: #{tpu_custom_call.1} parent=63 // pred_region
          %s590 = sand.u32 %s167, 1
          %s591 = scalar_lea.sflag [#allocation4], %s590
          %s592 = sand.u32 %s167, 1
          %s593 = scalar_lea.vmem [#allocation10], %s592
          %594 = dma.done %s591, 16
        $region68: #{tpu_custom_call.1} parent=63 // pred_fallthru
          _
        // Predicated region
        $region69: #{tpu_custom_call.1} parent=63 // pred_check
          %p595 = pneg %p210
        $region70: #{tpu_custom_call.1} parent=63 // pred_check_branch
          %597 = sbr.rel (%p595) target = $region72
        $region71: #{tpu_custom_call.1} parent=63 // pred_region
          %s598 = sand.u32 %s195, 1
          %s599 = scalar_lea.sflag [#allocation12], %s598
          %s600 = sand.u32 %s195, 1
          %s601 = smul.addr %s600, 8
          %s602 = scalar_lea.vmem [#allocation11], %s601
          %603 = dma.done %s599, 128
        $region72: #{tpu_custom_call.1} parent=63 // pred_fallthru
          _
      $region64: #{tpu_custom_call.1} parent=5 // pred_fallthru
        _
    $region6: #{tpu_custom_call.1} parent=1 // loop_footer
      %s31 = sadd.s32 1, %s27
    $region7: #{tpu_custom_call.1} parent=1 // loop_footer_branch
      %26 = sbr.rel target = $region3
    $region8: #{tpu_custom_call.1} parent=1 // loop_exit
      _
    %604 = vsyncpa [#allocation3], 1
    %s605 = scalar_lea.sflag [#allocation3], 1
    %606 = vsyncpa %s605, 1
    %607 = vsyncpa [#allocation6], 1
    %s608 = scalar_lea.sflag [#allocation6], 1
    %609 = vsyncpa %s608, 1
    %610 = vsyncpa [#allocation9], 1
    %s611 = scalar_lea.sflag [#allocation9], 1
    %612 = vsyncpa %s611, 1
    %613 = vsyncpa [#allocation4], 1
    %s614 = scalar_lea.sflag [#allocation4], 1
    %615 = vsyncpa %s614, 1
    %616 = vsyncpa [#allocation12], 1
    %s617 = scalar_lea.sflag [#allocation12], 1
    %618 = vsyncpa %s617, 1

</llo_original>
